<compile_context>
chip_gen: v5e
topology: v5e:2x2
jax: 0.10.0
libtpu: 0.0.40
codegen_flags: <defaults>
</compile_context>

<pallas_src>
import jax
import jax.numpy as jnp
from jax.experimental import pallas as pl
from jax.experimental.pallas import tpu as pltpu

STATE_DIM = 9
ACTION_DIM = 4
SA_DIM = STATE_DIM + ACTION_DIM          # 13
SA_PAD = 16                              # zero-padded K (bf16 sublane pack)
H1, H2, H3, OUT = 128, 64, 32, 1

LANE = 128
DEFAULT_TB = 2048                        # batch-tile cap (columns); v7x-safe


def _cdiv(a, b):
    return -(-a // b)


def _round_up(n, m):
    return _cdiv(n, m) * m


def _qnet_kernel(sa_ref, w1_ref, b1_ref, w2_ref, b2_ref, w3_ref, b3_ref,
                 w4_ref, b4_ref, out_ref):
    # Activations are (features, TB): the batch sits on the MXU N / lane axis.
    # Layer 1 (fc_sa; concat already folded into sa/w1): (128,16) @ (16,TB)
    h1 = jnp.dot(w1_ref[...], sa_ref[...], preferred_element_type=jnp.float32)
    h1 = jnp.maximum(h1 + b1_ref[...], 0.0).astype(jnp.bfloat16)
    # Layer 2 (fc_a): (64,128) @ (128,TB)
    h2 = jnp.dot(w2_ref[...], h1, preferred_element_type=jnp.float32)
    h2 = jnp.maximum(h2 + b2_ref[...], 0.0).astype(jnp.bfloat16)
    # Layer 3 (fc_q): (32,64) @ (64,TB)
    h3 = jnp.dot(w3_ref[...], h2, preferred_element_type=jnp.float32)
    h3 = jnp.maximum(h3 + b3_ref[...], 0.0).astype(jnp.bfloat16)
    # Layer 4 (fc_out): (1,32) @ (32,TB) -> lane-dense (1,TB) row.
    q = jnp.dot(w4_ref[...], h3, preferred_element_type=jnp.float32)
    out_ref[...] = (q + b4_ref[...]).astype(out_ref.dtype)


def _choose_tile(batch, tb_cap):
    """Pick (TB, grid_n). TB is a multiple of 128, or == batch for tiny B."""
    if batch <= LANE:
        return batch, 1                  # single exact block, no padding
    # >=2 tiles when the batch allows it (v7x has 2 TensorCores; harmless on
    # 1-TC chips), and at most tb_cap columns per tile.
    n_want = max(_cdiv(batch, tb_cap), 2)
    tb = min(tb_cap, _round_up(_cdiv(batch, n_want), LANE))
    return tb, _cdiv(batch, tb)


def _vmem_limit_bytes(tb):
    """VMEM budget from lane/sublane-padded block sizes (not raw sizes)."""
    in_bytes = 2 * (SA_PAD * tb * 2)                     # (16,TB) bf16, 2 bufs
    out_bytes = 2 * (8 * tb * 4)                         # (1->8,TB) f32, 2 bufs
    act_bytes = tb * (H1 * (4 + 2) + H2 * (4 + 2) + H3 * (4 + 2) + 8 * 4)
    weights = 64 * 1024
    need = in_bytes + out_bytes + act_bytes + weights
    return int(min(64 * 1024 * 1024, max(16 * 1024 * 1024, 4 * need)))


def qnet_forward(x, a, params, *, tb=DEFAULT_TB):
    """x: (B, 9) f32, a: (B, 4) f32 -> q: (B, 1) f32 (matches QNet.forward)."""
    B = x.shape[0]
    w1, b1, w2, b2, w3, b3, w4, b4 = params

    # Fused layer-1 operand: concat(state, action), zero-pad features 13->16,
    # transpose (batch -> lane axis), cast to bf16.  One XLA fusion pass.
    sa = jnp.concatenate([x, a], axis=1)                       # (B, 13) f32
    sa = jnp.pad(sa, ((0, 0), (0, SA_PAD - SA_DIM)))           # (B, 16)
    sa_t = sa.T.astype(jnp.bfloat16)                           # (16, B) bf16

    # Transposed bf16 weights / f32 biases (VMEM-resident across grid steps).
    w1t = jnp.pad(w1, ((0, SA_PAD - SA_DIM), (0, 0))).T.astype(jnp.bfloat16)
    w2t = w2.T.astype(jnp.bfloat16)                            # (64, 128)
    w3t = w3.T.astype(jnp.bfloat16)                            # (32, 64)
    w4t = w4.T.astype(jnp.bfloat16)                            # (1, 32)
    b1t, b2t, b3t = b1.T, b2.T, b3.T                           # (128/64/32, 1)

    TB, grid_n = _choose_tile(B, tb)

    def resident(arr):
        # Full-array block, constant index_map -> stays in VMEM across steps.
        return pl.BlockSpec(arr.shape, lambda i: (0, 0))

    out = pl.pallas_call(
        _qnet_kernel,
        out_shape=jax.ShapeDtypeStruct((1, B), jnp.float32),
        grid=(grid_n,),
        in_specs=[pl.BlockSpec((SA_PAD, TB), lambda i: (0, i)),
                  resident(w1t), resident(b1t),
                  resident(w2t), resident(b2t),
                  resident(w3t), resident(b3t),
                  resident(w4t), resident(b4)],
        out_specs=pl.BlockSpec((1, TB), lambda i: (0, i)),
        compiler_params=pltpu.CompilerParams(
            dimension_semantics=("parallel",),
            vmem_limit_bytes=_vmem_limit_bytes(TB)),
    )(sa_t, w1t, b1t, w2t, b2t, w3t, b3t, w4t, b4)

    return out[0].reshape(B, OUT)


def init_params(key):
    """Deterministic init matching nn.Linear shapes (stored as (in, out))."""
    dims = [(SA_DIM, H1), (H1, H2), (H2, H3), (H3, OUT)]
    params = []
    for i, (fan_in, fan_out) in enumerate(dims):
        kw, kb = jax.random.split(jax.random.fold_in(key, i))
        bound = 1.0 / jnp.sqrt(jnp.float32(fan_in))
        w = jax.random.uniform(kw, (fan_in, fan_out), jnp.float32, -bound, bound)
        b = jax.random.uniform(kb, (1, fan_out), jnp.float32, -bound, bound)
        params += [w, b]
    return tuple(params)


def reference_forward_f32(x, a, params):
    """Pure-f32 reference matching the PyTorch module exactly."""
    w1, b1, w2, b2, w3, b3, w4, b4 = params
    sa = jnp.concatenate([x, a], axis=1)
    h1 = jnp.maximum(sa @ w1 + b1, 0.0)
    h2 = jnp.maximum(h1 @ w2 + b2, 0.0)
    h3 = jnp.maximum(h2 @ w3 + b3, 0.0)
    return h3 @ w4 + b4


def reference_forward_mixed(x, a, params):
    """Reference mirroring the kernel's bf16-matmul / f32-accumulate math."""
    w1, b1, w2, b2, w3, b3, w4, b4 = params
    bf = jnp.bfloat16
    sa = jnp.concatenate([x, a], axis=1).astype(bf)
    h1 = jnp.dot(sa, w1.astype(bf), preferred_element_type=jnp.float32)
    h1 = jnp.maximum(h1 + b1, 0.0).astype(bf)
    h2 = jnp.dot(h1, w2.astype(bf), preferred_element_type=jnp.float32)
    h2 = jnp.maximum(h2 + b2, 0.0).astype(bf)
    h3 = jnp.dot(h2, w3.astype(bf), preferred_element_type=jnp.float32)
    h3 = jnp.maximum(h3 + b3, 0.0).astype(bf)
    q = jnp.dot(h3, w4.astype(bf), preferred_element_type=jnp.float32)
    return q + b4


if __name__ == "__main__":
    key = jax.random.PRNGKey(0)
    kx, ka, kp = jax.random.split(key, 3)

    B = 8
    x = jax.random.normal(kx, (B, STATE_DIM), jnp.float32)
    a = jax.random.normal(ka, (B, ACTION_DIM), jnp.float32)
    params = init_params(kp)

    q = jax.block_until_ready(qnet_forward(x, a, params))
    assert q.shape == (B, OUT)

    q_ref_mixed = reference_forward_mixed(x, a, params)
    q_ref_f32 = reference_forward_f32(x, a, params)
    # Tight check vs a reference using the same mixed precision as the kernel.
    assert jnp.allclose(q, q_ref_mixed, atol=2e-4, rtol=2e-4), "mismatch vs mixed ref"
    # Loose check vs the pure-f32 PyTorch-equivalent reference (bf16 error).
    assert jnp.allclose(q, q_ref_f32, atol=3e-2, rtol=3e-2), "mismatch vs f32 ref"

    print("KERNEL_OK")
</pallas_src>

<mosaic_0001>
module attributes {stable_mosaic.version = 11 : i64} {
  func.func @_qnet_kernel(%arg0: i32, %arg1: memref<16x8xbf16, #tpu.memory_space<vmem>>, %arg2: memref<128x16xbf16, #tpu.memory_space<vmem>>, %arg3: memref<128x1xf32, #tpu.memory_space<vmem>>, %arg4: memref<64x128xbf16, #tpu.memory_space<vmem>>, %arg5: memref<64x1xf32, #tpu.memory_space<vmem>>, %arg6: memref<32x64xbf16, #tpu.memory_space<vmem>>, %arg7: memref<32x1xf32, #tpu.memory_space<vmem>>, %arg8: memref<1x32xbf16, #tpu.memory_space<vmem>>, %arg9: memref<1x1xf32, #tpu.memory_space<vmem>>, %arg10: memref<1x8xf32, #tpu.memory_space<vmem>>) attributes {dimension_semantics = [#tpu.dimension_semantics<parallel>], iteration_bounds = array<i64: 1>, scalar_prefetch = 0 : i64, scratch_operands = 0 : i64, tpu.core_type = #tpu.core_type<tc>, window_params = [{transform_indices = @transform_0, window_bounds = array<i64: 16, 8>}, {pipeline_mode = #tpu.pipeline_mode<synchronous>, transform_indices = @transform_1, window_bounds = array<i64: 128, 16>}, {pipeline_mode = #tpu.pipeline_mode<synchronous>, transform_indices = @transform_2, window_bounds = array<i64: 128, 1>}, {pipeline_mode = #tpu.pipeline_mode<synchronous>, transform_indices = @transform_3, window_bounds = array<i64: 64, 128>}, {pipeline_mode = #tpu.pipeline_mode<synchronous>, transform_indices = @transform_4, window_bounds = array<i64: 64, 1>}, {pipeline_mode = #tpu.pipeline_mode<synchronous>, transform_indices = @transform_5, window_bounds = array<i64: 32, 64>}, {pipeline_mode = #tpu.pipeline_mode<synchronous>, transform_indices = @transform_6, window_bounds = array<i64: 32, 1>}, {pipeline_mode = #tpu.pipeline_mode<synchronous>, transform_indices = @transform_7, window_bounds = array<i64: 1, 32>}, {pipeline_mode = #tpu.pipeline_mode<synchronous>, transform_indices = @transform_8, window_bounds = array<i64: 1, 1>}, {transform_indices = @transform_9, window_bounds = array<i64: 1, 8>}]} {
    %c0 = arith.constant 0 : index
    %c0_0 = arith.constant 0 : index
    %0 = vector.load %arg2[%c0, %c0_0] : memref<128x16xbf16, #tpu.memory_space<vmem>>, vector<128x16xbf16>
    %c0_1 = arith.constant 0 : index
    %c0_2 = arith.constant 0 : index
    %1 = vector.load %arg1[%c0_1, %c0_2] : memref<16x8xbf16, #tpu.memory_space<vmem>>, vector<16x8xbf16>
    %cst = arith.constant dense<0.000000e+00> : vector<128x8xf32>
    %2 = tpu.matmul %0, %1, %cst {dimension_numbers = #tpu.dot_dimension_numbers<[1], [0], [0], [1], [0, 0, 1, 1], [], []>} : vector<128x16xbf16>, vector<16x8xbf16>, vector<128x8xf32> -> vector<128x8xf32>
    %c0_3 = arith.constant 0 : index
    %c0_4 = arith.constant 0 : index
    %3 = vector.load %arg3[%c0_3, %c0_4] : memref<128x1xf32, #tpu.memory_space<vmem>>, vector<128x1xf32>
    %4 = vector.broadcast %3 : vector<128x1xf32> to vector<128x8xf32>
    %5 = arith.addf %2, %4 : vector<128x8xf32>
    %cst_5 = arith.constant 0.000000e+00 : f32
    %6 = vector.broadcast %cst_5 : f32 to vector<128x8xf32>
    %7 = arith.maximumf %5, %6 : vector<128x8xf32>
    %8 = arith.truncf %7 : vector<128x8xf32> to vector<128x8xbf16>
    %c0_6 = arith.constant 0 : index
    %c0_7 = arith.constant 0 : index
    %9 = vector.load %arg4[%c0_6, %c0_7] : memref<64x128xbf16, #tpu.memory_space<vmem>>, vector<64x128xbf16>
    %cst_8 = arith.constant dense<0.000000e+00> : vector<64x8xf32>
    %10 = tpu.matmul %9, %8, %cst_8 {dimension_numbers = #tpu.dot_dimension_numbers<[1], [0], [0], [1], [0, 0, 1, 1], [], []>} : vector<64x128xbf16>, vector<128x8xbf16>, vector<64x8xf32> -> vector<64x8xf32>
    %c0_9 = arith.constant 0 : index
    %c0_10 = arith.constant 0 : index
    %11 = vector.load %arg5[%c0_9, %c0_10] : memref<64x1xf32, #tpu.memory_space<vmem>>, vector<64x1xf32>
    %12 = vector.broadcast %11 : vector<64x1xf32> to vector<64x8xf32>
    %13 = arith.addf %10, %12 : vector<64x8xf32>
    %cst_11 = arith.constant 0.000000e+00 : f32
    %14 = vector.broadcast %cst_11 : f32 to vector<64x8xf32>
    %15 = arith.maximumf %13, %14 : vector<64x8xf32>
    %16 = arith.truncf %15 : vector<64x8xf32> to vector<64x8xbf16>
    %c0_12 = arith.constant 0 : index
    %c0_13 = arith.constant 0 : index
    %17 = vector.load %arg6[%c0_12, %c0_13] : memref<32x64xbf16, #tpu.memory_space<vmem>>, vector<32x64xbf16>
    %cst_14 = arith.constant dense<0.000000e+00> : vector<32x8xf32>
    %18 = tpu.matmul %17, %16, %cst_14 {dimension_numbers = #tpu.dot_dimension_numbers<[1], [0], [0], [1], [0, 0, 1, 1], [], []>} : vector<32x64xbf16>, vector<64x8xbf16>, vector<32x8xf32> -> vector<32x8xf32>
    %c0_15 = arith.constant 0 : index
    %c0_16 = arith.constant 0 : index
    %19 = vector.load %arg7[%c0_15, %c0_16] : memref<32x1xf32, #tpu.memory_space<vmem>>, vector<32x1xf32>
    %20 = vector.broadcast %19 : vector<32x1xf32> to vector<32x8xf32>
    %21 = arith.addf %18, %20 : vector<32x8xf32>
    %cst_17 = arith.constant 0.000000e+00 : f32
    %22 = vector.broadcast %cst_17 : f32 to vector<32x8xf32>
    %23 = arith.maximumf %21, %22 : vector<32x8xf32>
    %24 = arith.truncf %23 : vector<32x8xf32> to vector<32x8xbf16>
    %c0_18 = arith.constant 0 : index
    %c0_19 = arith.constant 0 : index
    %25 = vector.load %arg8[%c0_18, %c0_19] : memref<1x32xbf16, #tpu.memory_space<vmem>>, vector<1x32xbf16>
    %cst_20 = arith.constant dense<0.000000e+00> : vector<1x8xf32>
    %26 = tpu.matmul %25, %24, %cst_20 {dimension_numbers = #tpu.dot_dimension_numbers<[1], [0], [0], [1], [0, 0, 1, 1], [], []>} : vector<1x32xbf16>, vector<32x8xbf16>, vector<1x8xf32> -> vector<1x8xf32>
    %c0_21 = arith.constant 0 : index
    %c0_22 = arith.constant 0 : index
    %27 = vector.load %arg9[%c0_21, %c0_22] : memref<1x1xf32, #tpu.memory_space<vmem>>, vector<1x1xf32>
    %28 = vector.broadcast %27 : vector<1x1xf32> to vector<1x8xf32>
    %29 = arith.addf %26, %28 : vector<1x8xf32>
    %c0_23 = arith.constant 0 : index
    %c0_24 = arith.constant 0 : index
    %30 = vector.load %arg10[%c0_23, %c0_24] : memref<1x8xf32, #tpu.memory_space<vmem>>, vector<1x8xf32>
    tpu.vector_store %arg10[%c0_23, %c0_24], %29 {strides = array<i32>} : memref<1x8xf32, #tpu.memory_space<vmem>>, vector<1x8xf32>,
    return
  }
  func.func @transform_0(%arg0: i32) -> (i32, i32) {
    %c0_i32 = arith.constant 0 : i32
    %c0_i32_0 = arith.constant 0 : i32
    return %c0_i32, %arg0 : i32, i32
  }
  func.func @transform_1(%arg0: i32) -> (i32, i32) {
    %c0_i32 = arith.constant 0 : i32
    %c0_i32_0 = arith.constant 0 : i32
    %c0_i32_1 = arith.constant 0 : i32
    return %c0_i32, %c0_i32_0 : i32, i32
  }
  func.func @transform_2(%arg0: i32) -> (i32, i32) {
    %c0_i32 = arith.constant 0 : i32
    %c0_i32_0 = arith.constant 0 : i32
    %c0_i32_1 = arith.constant 0 : i32
    return %c0_i32, %c0_i32_0 : i32, i32
  }
  func.func @transform_3(%arg0: i32) -> (i32, i32) {
    %c0_i32 = arith.constant 0 : i32
    %c0_i32_0 = arith.constant 0 : i32
    %c0_i32_1 = arith.constant 0 : i32
    return %c0_i32, %c0_i32_0 : i32, i32
  }
  func.func @transform_4(%arg0: i32) -> (i32, i32) {
    %c0_i32 = arith.constant 0 : i32
    %c0_i32_0 = arith.constant 0 : i32
    %c0_i32_1 = arith.constant 0 : i32
    return %c0_i32, %c0_i32_0 : i32, i32
  }
  func.func @transform_5(%arg0: i32) -> (i32, i32) {
    %c0_i32 = arith.constant 0 : i32
    %c0_i32_0 = arith.constant 0 : i32
    %c0_i32_1 = arith.constant 0 : i32
    return %c0_i32, %c0_i32_0 : i32, i32
  }
  func.func @transform_6(%arg0: i32) -> (i32, i32) {
    %c0_i32 = arith.constant 0 : i32
    %c0_i32_0 = arith.constant 0 : i32
    %c0_i32_1 = arith.constant 0 : i32
    return %c0_i32, %c0_i32_0 : i32, i32
  }
  func.func @transform_7(%arg0: i32) -> (i32, i32) {
    %c0_i32 = arith.constant 0 : i32
    %c0_i32_0 = arith.constant 0 : i32
    %c0_i32_1 = arith.constant 0 : i32
    return %c0_i32, %c0_i32_0 : i32, i32
  }
  func.func @transform_8(%arg0: i32) -> (i32, i32) {
    %c0_i32 = arith.constant 0 : i32
    %c0_i32_0 = arith.constant 0 : i32
    %c0_i32_1 = arith.constant 0 : i32
    return %c0_i32, %c0_i32_0 : i32, i32
  }
  func.func @transform_9(%arg0: i32) -> (i32, i32) {
    %c0_i32 = arith.constant 0 : i32
    %c0_i32_0 = arith.constant 0 : i32
    return %c0_i32, %arg0 : i32, i32
  }
}

</mosaic_0001>

<llo_original>
// kernel: tpu_custom_call.1
$region0: #{tpu_custom_call.1}
  #allocation0 [shape = 'u32[]', space=smem, size = 0x4, offset = 0x4, fixed_abs, tag = 'smem constant byte address 0x4 - core index']
  #allocation1 [shape = 'u32[72,128]{1,0:T(1,128)}', space=vmem, size = 0x9000, scoped, tag = 'internal scratch']
  #allocation2 [shape = 'f32[1,1]{1,0:T(1,128)S(1)}', space=vmem, size = 0x200, scoped, tag = 'scoped memory for tpu_custom_call.1']
  %s0 = inlined_call_operand.vmem [shape: bf16[16,8], index: 0, kind: input, shape index: {}]
  %s1 = inlined_call_operand.vmem [shape: bf16[128,16], index: 1, kind: input, shape index: {}]
  %s2 = inlined_call_operand.vmem [shape: f32[128,1], index: 2, kind: input, shape index: {}]
  %s3 = inlined_call_operand.vmem [shape: bf16[64,128], index: 3, kind: input, shape index: {}]
  %s4 = inlined_call_operand.vmem [shape: f32[64,1], index: 4, kind: input, shape index: {}]
  %s5 = inlined_call_operand.vmem [shape: bf16[32,64], index: 5, kind: input, shape index: {}]
  %s6 = inlined_call_operand.vmem [shape: f32[32,1], index: 6, kind: input, shape index: {}]
  %s7 = inlined_call_operand.vmem [shape: bf16[1,32], index: 7, kind: input, shape index: {}]
  %s8 = inlined_call_operand.<no memory space> [shape: f32[1,1], index: 8, kind: input, shape index: {}]
  %s9 = inlined_call_operand.hbm [shape: f32[1,8], index: 9, kind: output, shape index: {}]
  %s10 = sld [smem:[#allocation0]]
  $region46: #{tpu_custom_call.1} parent=0
    _
  %s12 = ssub.s32 1, %s10
  %s13 = scalar_select 0, %s12, %s10
  %v14 = vstv %s8
  %15 = vst [vmem:[#allocation2] sm:$0x1] %v14
  $region1: #{tpu_custom_call.1} parent=0
    #allocation3 [shape = 'u8[512]{0}', space=vmem, size = 0x400, scoped, tag = 'output window, operand 0, single buffered']
    #allocation4 [shape = 's32[1]{0}', space=sflag, size = 0x4, scoped, tag = 'scoped memory for tpu_custom_call.1']
    %16 = vsyncpa [#allocation4], 0
    // Predicated region
    $region2: #{tpu_custom_call.1} parent=1 // pred_check
      _
    $region3: #{tpu_custom_call.1} parent=1 // pred_check_branch
      %18 = sbr.rel (0) target = $region5
    $region4: #{tpu_custom_call.1} parent=1 // pred_region
      _
    $region5: #{tpu_custom_call.1} parent=1 // pred_fallthru
      _
    // Predicated region
    $region6: #{tpu_custom_call.1} parent=1 // pred_check
      _
    $region7: #{tpu_custom_call.1} parent=1 // pred_check_branch
      %20 = sbr.rel (0) target = $region9
    $region8: #{tpu_custom_call.1} parent=1 // pred_region
      _
    $region9: #{tpu_custom_call.1} parent=1 // pred_fallthru
      _
    // Predicated region
    $region10: #{tpu_custom_call.1} parent=1 // pred_check
      _
    $region11: #{tpu_custom_call.1} parent=1 // pred_check_branch
      %22 = sbr.rel (0) target = $region13
    $region12: #{tpu_custom_call.1} parent=1 // pred_region
      _
    $region13: #{tpu_custom_call.1} parent=1 // pred_fallthru
      _
    // Predicated region
    $region14: #{tpu_custom_call.1} parent=1 // pred_check
      _
    $region15: #{tpu_custom_call.1} parent=1 // pred_check_branch
      %24 = sbr.rel (0) target = $region17
    $region16: #{tpu_custom_call.1} parent=1 // pred_region
      _
    $region17: #{tpu_custom_call.1} parent=1 // pred_fallthru
      _
    // Predicated region
    $region18: #{tpu_custom_call.1} parent=1 // pred_check
      _
    $region19: #{tpu_custom_call.1} parent=1 // pred_check_branch
      %26 = sbr.rel (0) target = $region21
    $region20: #{tpu_custom_call.1} parent=1 // pred_region
      _
    $region21: #{tpu_custom_call.1} parent=1 // pred_fallthru
      _
    // Predicated region
    $region22: #{tpu_custom_call.1} parent=1 // pred_check
      _
    $region23: #{tpu_custom_call.1} parent=1 // pred_check_branch
      %28 = sbr.rel (0) target = $region25
    $region24: #{tpu_custom_call.1} parent=1 // pred_region
      _
    $region25: #{tpu_custom_call.1} parent=1 // pred_fallthru
      _
    // Predicated region
    $region26: #{tpu_custom_call.1} parent=1 // pred_check
      _
    $region27: #{tpu_custom_call.1} parent=1 // pred_check_branch
      %30 = sbr.rel (0) target = $region29
    $region28: #{tpu_custom_call.1} parent=1 // pred_region
      _
    $region29: #{tpu_custom_call.1} parent=1 // pred_fallthru
      _
    // Predicated region
    $region30: #{tpu_custom_call.1} parent=1 // pred_check
      _
    $region31: #{tpu_custom_call.1} parent=1 // pred_check_branch
      %32 = sbr.rel (0) target = $region33
    $region32: #{tpu_custom_call.1} parent=1 // pred_region
      _
    $region33: #{tpu_custom_call.1} parent=1 // pred_fallthru
      _
    // Predicated region
    $region34: #{tpu_custom_call.1} parent=1 // pred_check
      _
    $region35: #{tpu_custom_call.1} parent=1 // pred_check_branch
      %34 = sbr.rel (0) target = $region37
    $region36: #{tpu_custom_call.1} parent=1 // pred_region
      _
    $region37: #{tpu_custom_call.1} parent=1 // pred_fallthru
      _
    %v36 = vld [vmem:[%s1] sm:$0xf]
    %v37 = vld [vmem:[%s1 + $0x4] sm:$0xf]
    %v38 = vld [vmem:[%s1 + $0x8] sm:$0xf]
    %v39 = vld [vmem:[%s1 + $0xc] sm:$0xf]
    %v40 = vld [vmem:[%s1 + $0x10] sm:$0xf]
    %v41 = vld [vmem:[%s1 + $0x14] sm:$0xf]
    %v42 = vld [vmem:[%s1 + $0x18] sm:$0xf]
    %v43 = vld [vmem:[%s1 + $0x1c] sm:$0xf]
    %v44 = vld [vmem:[%s1 + $0x20] sm:$0xf]
    %v45 = vld [vmem:[%s1 + $0x24] sm:$0xf]
    %v46 = vld [vmem:[%s1 + $0x28] sm:$0xf]
    %v47 = vld [vmem:[%s1 + $0x2c] sm:$0xf]
    %v48 = vld [vmem:[%s1 + $0x30] sm:$0xf]
    %v49 = vld [vmem:[%s1 + $0x34] sm:$0xf]
    %v50 = vld [vmem:[%s1 + $0x38] sm:$0xf]
    %v51 = vld [vmem:[%s1 + $0x3c] sm:$0xf]
    %v52 = vld [vmem:[%s0] sm:$0xf]
    %v53 = vld [vmem:[%s0 + $0x4] sm:$0xf]
    %v54 = vld [vmem:[%s2] sm:$0xff]
    %v55 = vld [vmem:[%s2 + $0x8] sm:$0xff]
    %v56 = vld [vmem:[%s2 + $0x10] sm:$0xff]
    %v57 = vld [vmem:[%s2 + $0x18] sm:$0xff]
    %v58 = vld [vmem:[%s2 + $0x20] sm:$0xff]
    %v59 = vld [vmem:[%s2 + $0x28] sm:$0xff]
    %v60 = vld [vmem:[%s2 + $0x30] sm:$0xff]
    %v61 = vld [vmem:[%s2 + $0x38] sm:$0xff]
    %v62 = vld [vmem:[%s2 + $0x40] sm:$0xff]
    %v63 = vld [vmem:[%s2 + $0x48] sm:$0xff]
    %v64 = vld [vmem:[%s2 + $0x50] sm:$0xff]
    %v65 = vld [vmem:[%s2 + $0x58] sm:$0xff]
    %v66 = vld [vmem:[%s2 + $0x60] sm:$0xff]
    %v67 = vld [vmem:[%s2 + $0x68] sm:$0xff]
    %v68 = vld [vmem:[%s2 + $0x70] sm:$0xff]
    %v69 = vld [vmem:[%s2 + $0x78] sm:$0xff]
    %71 = vset.pattern.permute.xlu0 0
    %72 = vperm.xlu0 %71, %v54
    %v73 = vpop.permute.xlu0 %72
    %76 = vset.pattern.permute.xlu0 0
    %77 = vperm.xlu0 %76, %v55
    %v78 = vpop.permute.xlu0 %77
    %81 = vset.pattern.permute.xlu0 0
    %82 = vperm.xlu0 %81, %v56
    %v83 = vpop.permute.xlu0 %82
    %86 = vset.pattern.permute.xlu0 0
    %87 = vperm.xlu0 %86, %v57
    %v88 = vpop.permute.xlu0 %87
    %91 = vset.pattern.permute.xlu0 0
    %92 = vperm.xlu0 %91, %v58
    %v93 = vpop.permute.xlu0 %92
    %96 = vset.pattern.permute.xlu0 0
    %97 = vperm.xlu0 %96, %v59
    %v98 = vpop.permute.xlu0 %97
    %101 = vset.pattern.permute.xlu0 0
    %102 = vperm.xlu0 %101, %v60
    %v103 = vpop.permute.xlu0 %102
    %106 = vset.pattern.permute.xlu0 0
    %107 = vperm.xlu0 %106, %v61
    %v108 = vpop.permute.xlu0 %107
    %111 = vset.pattern.permute.xlu0 0
    %112 = vperm.xlu0 %111, %v62
    %v113 = vpop.permute.xlu0 %112
    %116 = vset.pattern.permute.xlu0 0
    %117 = vperm.xlu0 %116, %v63
    %v118 = vpop.permute.xlu0 %117
    %121 = vset.pattern.permute.xlu0 0
    %122 = vperm.xlu0 %121, %v64
    %v123 = vpop.permute.xlu0 %122
    %126 = vset.pattern.permute.xlu0 0
    %127 = vperm.xlu0 %126, %v65
    %v128 = vpop.permute.xlu0 %127
    %131 = vset.pattern.permute.xlu0 0
    %132 = vperm.xlu0 %131, %v66
    %v133 = vpop.permute.xlu0 %132
    %136 = vset.pattern.permute.xlu0 0
    %137 = vperm.xlu0 %136, %v67
    %v138 = vpop.permute.xlu0 %137
    %141 = vset.pattern.permute.xlu0 0
    %142 = vperm.xlu0 %141, %v68
    %v143 = vpop.permute.xlu0 %142
    %146 = vset.pattern.permute.xlu0 0
    %147 = vperm.xlu0 %146, %v69
    %v148 = vpop.permute.xlu0 %147
    %v166 = vunpack.c.l.b16 %v36
    %v167 = vunpack.c.l.b16 %v37
    %v168 = vunpack.c.l.b16 %v38
    %v169 = vunpack.c.l.b16 %v39
    %v170 = vunpack.c.l.b16 %v40
    %v171 = vunpack.c.l.b16 %v41
    %v172 = vunpack.c.l.b16 %v42
    %v173 = vunpack.c.l.b16 %v43
    %v174 = vunpack.c.l.b16 %v44
    %v175 = vunpack.c.l.b16 %v45
    %v176 = vunpack.c.l.b16 %v46
    %v177 = vunpack.c.l.b16 %v47
    %v178 = vunpack.c.l.b16 %v48
    %v179 = vunpack.c.l.b16 %v49
    %v180 = vunpack.c.l.b16 %v50
    %v181 = vunpack.c.l.b16 %v51
    %v182 = vpack.c.b16 %v167, %v166
    %v183 = vpack.c.b16 %v169, %v168
    %v184 = vpack.c.b16 %v171, %v170
    %v185 = vpack.c.b16 %v173, %v172
    %v186 = vpack.c.b16 %v175, %v174
    %v187 = vpack.c.b16 %v177, %v176
    %v188 = vpack.c.b16 %v179, %v178
    %v189 = vpack.c.b16 %v181, %v180
    %v192 = vunpack.c.l.b16 %v52
    %v193 = vunpack.c.l.b16 %v53
    %v194 = vpack.c.b16 %v193, %v192
    %vm196 = vcmask 130048
    %v198 = vsel %vm196, %v182, 0
    %v201 = vsel %vm196, %v183, 0
    %v204 = vsel %vm196, %v184, 0
    %v207 = vsel %vm196, %v185, 0
    %v210 = vsel %vm196, %v186, 0
    %v213 = vsel %vm196, %v187, 0
    %v216 = vsel %vm196, %v188, 0
    %v219 = vsel %vm196, %v189, 0
    %221 = vmatpush.bf16.msra.mxu0 0
    %222 = vmatpush.bf16.msra.mxu0 0
    %223 = vmatpush.bf16.msra.mxu0 0
    %224 = vmatpush.bf16.msra.mxu0 0
    %225 = vmatpush.bf16.msra.mxu0 0
    %226 = vmatpush.bf16.msra.mxu0 0
    %227 = vmatpush.bf16.msra.mxu0 0
    %228 = vmatpush.bf16.msra.mxu0 %v194
    %229 = vmatmul.bf16.gmra.mxu0 %v198
    %v230 = vpop.f32.mrf.mxu0
    %v231 = vadd.f32 %v73, %v230
    %v232 = vpop.f32.mrf.mxu0
    %v233 = vadd.f32 %v78, %v232
    %234 = vmatmul.bf16.gmra.mxu0 %v201
    %v235 = vpop.f32.mrf.mxu0
    %v236 = vadd.f32 %v83, %v235
    %v237 = vpop.f32.mrf.mxu0
    %v238 = vadd.f32 %v88, %v237
    %239 = vmatmul.bf16.gmra.mxu0 %v204
    %v240 = vpop.f32.mrf.mxu0
    %v241 = vadd.f32 %v93, %v240
    %v242 = vpop.f32.mrf.mxu0
    %v243 = vadd.f32 %v98, %v242
    %244 = vmatmul.bf16.gmra.mxu0 %v207
    %v245 = vpop.f32.mrf.mxu0
    %v246 = vadd.f32 %v103, %v245
    %v247 = vpop.f32.mrf.mxu0
    %v248 = vadd.f32 %v108, %v247
    %249 = vmatmul.bf16.gmra.mxu0 %v210
    %v250 = vpop.f32.mrf.mxu0
    %v251 = vadd.f32 %v113, %v250
    %v252 = vpop.f32.mrf.mxu0
    %v253 = vadd.f32 %v118, %v252
    %254 = vmatmul.bf16.gmra.mxu0 %v213
    %v255 = vpop.f32.mrf.mxu0
    %v256 = vadd.f32 %v123, %v255
    %v257 = vpop.f32.mrf.mxu0
    %v258 = vadd.f32 %v128, %v257
    %259 = vmatmul.bf16.gmra.mxu0 %v216
    %v260 = vpop.f32.mrf.mxu0
    %v261 = vadd.f32 %v133, %v260
    %v262 = vpop.f32.mrf.mxu0
    %v263 = vadd.f32 %v138, %v262
    %264 = vmatmul.bf16.gmra.mxu0 %v219
    %v265 = vpop.f32.mrf.mxu0
    %v266 = vadd.f32 %v143, %v265
    %v267 = vpop.f32.mrf.mxu0
    %v268 = vadd.f32 %v148, %v267
    %269 = vdwg.mxu0
    %v270 = vmax.f32 %v231, 0.0
    %v271 = vmax.f32 %v233, 0.0
    %v272 = vmax.f32 %v236, 0.0
    %v273 = vmax.f32 %v238, 0.0
    %v274 = vmax.f32 %v241, 0.0
    %v275 = vmax.f32 %v243, 0.0
    %v276 = vmax.f32 %v246, 0.0
    %v277 = vmax.f32 %v248, 0.0
    %v278 = vmax.f32 %v251, 0.0
    %v279 = vmax.f32 %v253, 0.0
    %v280 = vmax.f32 %v256, 0.0
    %v281 = vmax.f32 %v258, 0.0
    %v282 = vmax.f32 %v261, 0.0
    %v283 = vmax.f32 %v263, 0.0
    %v284 = vmax.f32 %v266, 0.0
    %v285 = vmax.f32 %v268, 0.0
    %v286 = vpack.c.bf16 %v271, %v270
    %v287 = vpack.c.bf16 %v273, %v272
    %v288 = vpack.c.bf16 %v275, %v274
    %v289 = vpack.c.bf16 %v277, %v276
    %v290 = vpack.c.bf16 %v279, %v278
    %v291 = vpack.c.bf16 %v281, %v280
    %v292 = vpack.c.bf16 %v283, %v282
    %v293 = vpack.c.bf16 %v285, %v284
    %v294 = vld [vmem:[%s3] sm:$0xf]
    %v295 = vld [vmem:[%s3 + $0x4] sm:$0xf]
    %v296 = vld [vmem:[%s3 + $0x8] sm:$0xf]
    %v297 = vld [vmem:[%s3 + $0xc] sm:$0xf]
    %v298 = vld [vmem:[%s3 + $0x10] sm:$0xf]
    %v299 = vld [vmem:[%s3 + $0x14] sm:$0xf]
    %v300 = vld [vmem:[%s3 + $0x18] sm:$0xf]
    %v301 = vld [vmem:[%s3 + $0x1c] sm:$0xf]
    %v302 = vld [vmem:[%s4] sm:$0xff]
    %v303 = vld [vmem:[%s4 + $0x8] sm:$0xff]
    %v304 = vld [vmem:[%s4 + $0x10] sm:$0xff]
    %v305 = vld [vmem:[%s4 + $0x18] sm:$0xff]
    %v306 = vld [vmem:[%s4 + $0x20] sm:$0xff]
    %v307 = vld [vmem:[%s4 + $0x28] sm:$0xff]
    %v308 = vld [vmem:[%s4 + $0x30] sm:$0xff]
    %v309 = vld [vmem:[%s4 + $0x38] sm:$0xff]
    %311 = vset.pattern.permute.xlu0 0
    %312 = vperm.xlu0 %311, %v302
    %v313 = vpop.permute.xlu0 %312
    %316 = vset.pattern.permute.xlu0 0
    %317 = vperm.xlu0 %316, %v303
    %v318 = vpop.permute.xlu0 %317
    %321 = vset.pattern.permute.xlu0 0
    %322 = vperm.xlu0 %321, %v304
    %v323 = vpop.permute.xlu0 %322
    %326 = vset.pattern.permute.xlu0 0
    %327 = vperm.xlu0 %326, %v305
    %v328 = vpop.permute.xlu0 %327
    %331 = vset.pattern.permute.xlu0 0
    %332 = vperm.xlu0 %331, %v306
    %v333 = vpop.permute.xlu0 %332
    %336 = vset.pattern.permute.xlu0 0
    %337 = vperm.xlu0 %336, %v307
    %v338 = vpop.permute.xlu0 %337
    %341 = vset.pattern.permute.xlu0 0
    %342 = vperm.xlu0 %341, %v308
    %v343 = vpop.permute.xlu0 %342
    %346 = vset.pattern.permute.xlu0 0
    %347 = vperm.xlu0 %346, %v309
    %v348 = vpop.permute.xlu0 %347
    %v358 = vunpack.c.l.b16 %v294
    %v359 = vunpack.c.l.b16 %v295
    %v360 = vunpack.c.l.b16 %v296
    %v361 = vunpack.c.l.b16 %v297
    %v362 = vunpack.c.l.b16 %v298
    %v363 = vunpack.c.l.b16 %v299
    %v364 = vunpack.c.l.b16 %v300
    %v365 = vunpack.c.l.b16 %v301
    %v366 = vpack.c.b16 %v359, %v358
    %v367 = vpack.c.b16 %v361, %v360
    %v368 = vpack.c.b16 %v363, %v362
    %v369 = vpack.c.b16 %v365, %v364
    %374 = vmatpush.bf16.msra.mxu0 %v293
    %375 = vmatpush.bf16.msra.mxu0 %v292
    %376 = vmatpush.bf16.msra.mxu0 %v291
    %377 = vmatpush.bf16.msra.mxu0 %v290
    %378 = vmatpush.bf16.msra.mxu0 %v289
    %379 = vmatpush.bf16.msra.mxu0 %v288
    %380 = vmatpush.bf16.msra.mxu0 %v287
    %381 = vmatpush.bf16.msra.mxu0 %v286
    %382 = vmatmul.bf16.gmra.mxu0 %v366
    %v383 = vpop.f32.mrf.mxu0
    %v384 = vadd.f32 %v313, %v383
    %v385 = vpop.f32.mrf.mxu0
    %v386 = vadd.f32 %v318, %v385
    %387 = vmatmul.bf16.gmra.mxu0 %v367
    %v388 = vpop.f32.mrf.mxu0
    %v389 = vadd.f32 %v323, %v388
    %v390 = vpop.f32.mrf.mxu0
    %v391 = vadd.f32 %v328, %v390
    %392 = vmatmul.bf16.gmra.mxu0 %v368
    %v393 = vpop.f32.mrf.mxu0
    %v394 = vadd.f32 %v333, %v393
    %v395 = vpop.f32.mrf.mxu0
    %v396 = vadd.f32 %v338, %v395
    %397 = vmatmul.bf16.gmra.mxu0 %v369
    %v398 = vpop.f32.mrf.mxu0
    %v399 = vadd.f32 %v343, %v398
    %v400 = vpop.f32.mrf.mxu0
    %v401 = vadd.f32 %v348, %v400
    %402 = vdwg.mxu0
    %v403 = vmax.f32 %v384, 0.0
    %v404 = vmax.f32 %v386, 0.0
    %v405 = vmax.f32 %v389, 0.0
    %v406 = vmax.f32 %v391, 0.0
    %v407 = vmax.f32 %v394, 0.0
    %v408 = vmax.f32 %v396, 0.0
    %v409 = vmax.f32 %v399, 0.0
    %v410 = vmax.f32 %v401, 0.0
    %v411 = vpack.c.bf16 %v404, %v403
    %v412 = vpack.c.bf16 %v406, %v405
    %v413 = vpack.c.bf16 %v408, %v407
    %v414 = vpack.c.bf16 %v410, %v409
    %v415 = vld [vmem:[%s5] sm:$0xf]
    %v416 = vld [vmem:[%s5 + $0x4] sm:$0xf]
    %v417 = vld [vmem:[%s5 + $0x8] sm:$0xf]
    %v418 = vld [vmem:[%s5 + $0xc] sm:$0xf]
    %v419 = vld [vmem:[%s6] sm:$0xff]
    %v420 = vld [vmem:[%s6 + $0x8] sm:$0xff]
    %v421 = vld [vmem:[%s6 + $0x10] sm:$0xff]
    %v422 = vld [vmem:[%s6 + $0x18] sm:$0xff]
    %424 = vset.pattern.permute.xlu0 0
    %425 = vperm.xlu0 %424, %v419
    %v426 = vpop.permute.xlu0 %425
    %429 = vset.pattern.permute.xlu0 0
    %430 = vperm.xlu0 %429, %v420
    %v431 = vpop.permute.xlu0 %430
    %434 = vset.pattern.permute.xlu0 0
    %435 = vperm.xlu0 %434, %v421
    %v436 = vpop.permute.xlu0 %435
    %439 = vset.pattern.permute.xlu0 0
    %440 = vperm.xlu0 %439, %v422
    %v441 = vpop.permute.xlu0 %440
    %v447 = vunpack.c.l.b16 %v415
    %v448 = vunpack.c.l.b16 %v416
    %v449 = vunpack.c.l.b16 %v417
    %v450 = vunpack.c.l.b16 %v418
    %v451 = vpack.c.b16 %v448, %v447
    %v452 = vpack.c.b16 %v450, %v449
    %vm453 = vcmask 523264
    %v455 = vsel %vm453, %v451, 0
    %v458 = vsel %vm453, %v452, 0
    %460 = vmatpush.bf16.msra.mxu0 0
    %461 = vmatpush.bf16.msra.mxu0 0
    %462 = vmatpush.bf16.msra.mxu0 0
    %463 = vmatpush.bf16.msra.mxu0 0
    %464 = vmatpush.bf16.msra.mxu0 %v414
    %465 = vmatpush.bf16.msra.mxu0 %v413
    %466 = vmatpush.bf16.msra.mxu0 %v412
    %467 = vmatpush.bf16.msra.mxu0 %v411
    %468 = vmatmul.bf16.gmra.mxu0 %v455
    %v469 = vpop.f32.mrf.mxu0
    %v470 = vadd.f32 %v426, %v469
    %v471 = vpop.f32.mrf.mxu0
    %v472 = vadd.f32 %v431, %v471
    %473 = vmatmul.bf16.gmra.mxu0 %v458
    %v474 = vpop.f32.mrf.mxu0
    %v475 = vadd.f32 %v436, %v474
    %v476 = vpop.f32.mrf.mxu0
    %v477 = vadd.f32 %v441, %v476
    %478 = vdwg.mxu0
    %v479 = vmax.f32 %v470, 0.0
    %v480 = vmax.f32 %v472, 0.0
    %v481 = vmax.f32 %v475, 0.0
    %v482 = vmax.f32 %v477, 0.0
    %v483 = vpack.c.bf16 %v480, %v479
    %v484 = vpack.c.bf16 %v482, %v481
    %v485 = vld [vmem:[%s7] sm:$0x1]
    %v486 = vld [vmem:[#allocation2] sm:$0x1]
    %488 = vset.pattern.permute.xlu0 0
    %489 = vperm.xlu0 %488, %v486
    %v490 = vpop.permute.xlu0 %489
    %v492 = vperm.slane %v490, 0
    %vm493 = vcmask 261120
    %v495 = vsel %vm493, %v485, 0
    %497 = vmatpush.bf16.msra.mxu0 0
    %498 = vmatpush.bf16.msra.mxu0 0
    %499 = vmatpush.bf16.msra.mxu0 0
    %500 = vmatpush.bf16.msra.mxu0 0
    %501 = vmatpush.bf16.msra.mxu0 0
    %502 = vmatpush.bf16.msra.mxu0 0
    %503 = vmatpush.bf16.msra.mxu0 %v484
    %504 = vmatpush.bf16.msra.mxu0 %v483
    %505 = vmatmul.bf16.gmra.mxu0 %v495
    %v506 = vpop.f32.mrf.mxu0
    %v507 = vadd.f32 %v492, %v506
    %v508 = vpop.f32.mrf.mxu0
    %509 = vdwg.mxu0
    %vm510 = vcmask 57344
    %511 = vst.msk [vmem:[#allocation3] sm:$0x1] %vm510, %v507
    // Predicated region
    $region38: #{tpu_custom_call.1} parent=1 // pred_check
      _
    $region39: #{tpu_custom_call.1} parent=1 // pred_check_branch
      %513 = sbr.rel (0) target = $region41
    $region40: #{tpu_custom_call.1} parent=1 // pred_region
      %515 = vsyncadd [#allocation4], 0
      %s517 = sshll.u32 [#allocation3], 4
      %s518 = int_to_ptr.vmem [resolvable:$true] %s517
      %s519 = sshll.u32 %s9, 4
      %s520 = int_to_ptr.hbm [resolvable:$true] %s519
      %522 = dma.vmem_to_hbm [thread:$0]  %s518, 16, %s520, [#allocation4]
    $region41: #{tpu_custom_call.1} parent=1 // pred_fallthru
      _
    // Predicated region
    $region42: #{tpu_custom_call.1} parent=1 // pred_check
      _
    $region43: #{tpu_custom_call.1} parent=1 // pred_check_branch
      %524 = sbr.rel (0) target = $region45
    $region44: #{tpu_custom_call.1} parent=1 // pred_region
      %526 = dma.done [#allocation4], 16
    $region45: #{tpu_custom_call.1} parent=1 // pred_fallthru
      _
    %527 = vsyncpa [#allocation4], 1

</llo_original>
